<compile_context>
chip_gen: v5e
topology: v5e:2x2
jax: 0.10.0
libtpu: 0.0.40
codegen_flags: <defaults>
</compile_context>

<pallas_src>
import functools

import jax
import jax.numpy as jnp
from jax.experimental import pallas as pl
from jax.experimental.pallas import tpu as pltpu


def autopad(k, p=None):
    return k // 2 if p is None else p


# --------------------------------------------------------------------------------------
# Kernel 1: Conv3d (as per-tap GEMMs) + fused partial BN statistics
# --------------------------------------------------------------------------------------
def _conv_stats_kernel(x_ref, w_ref, conv_ref, stats_ref, *, k, Ho):
    # x_ref:     (1, 1, Hp, Wp*C1)   bf16  -- padded depth slab (d + kd), lanes = (w, c1)
    # w_ref:     (k, k, Wp*C1, Wo*C2) bf16 -- block-Toeplitz weights, resident across grid
    # conv_ref:  (1, 1, Ho, Wo*C2)   f32   -- conv output block, revisited across kd
    # stats_ref: (1, 1, 2,  Wo*C2)   f32   -- per-(n,d) partial [sum, sum_sq] over H
    kd = pl.program_id(2)

    @pl.when(kd == 0)
    def _init():
        conv_ref[...] = jnp.zeros_like(conv_ref)

    x = x_ref[0, 0]          # (Hp, Wp*C1)
    w_kd = w_ref[kd]         # (k, Wp*C1, Wo*C2), dynamic leading-axis index

    acc = conv_ref[0, 0]     # resident f32 accumulator (output block)
    for kh in range(k):      # cheap leading-dim (sublane) slices only
        acc = acc + jnp.dot(x[kh:kh + Ho, :], w_kd[kh],
                            preferred_element_type=jnp.float32)
    conv_ref[0, 0] = acc

    @pl.when(kd == k - 1)
    def _stats():
        s1 = jnp.sum(acc, axis=0, keepdims=True)
        s2 = jnp.sum(acc * acc, axis=0, keepdims=True)
        stats_ref[0, 0] = jnp.concatenate([s1, s2], axis=0)


# --------------------------------------------------------------------------------------
# Kernel 2: BatchNorm (precomputed per-channel scale/shift) + SiLU, lane-dense
# --------------------------------------------------------------------------------------
def _bn_silu_kernel(y_ref, scale_ref, shift_ref, o_ref):
    # y_ref: (1, 1, Ho, Wo*C2) f32 ; scale/shift: (1, Wo*C2) f32 (channel tiled over W)
    y = y_ref[0, 0] * scale_ref[...] + shift_ref[...]
    o_ref[0, 0] = y * jax.nn.sigmoid(y)


# --------------------------------------------------------------------------------------
# Wrapper
# --------------------------------------------------------------------------------------
@functools.partial(jax.jit, static_argnames=("k", "p", "eps"))
def conv_bn_silu(x_ncdhw, w_oidhw, gamma, beta, *, k, p=None, eps=1e-5):
    """Conv3d(k, s=1, pad=autopad(k,p), bias=False) + BatchNorm3d (batch stats) + SiLU.

    x_ncdhw : (N, C1, D, H, W)    (PyTorch layout)
    w_oidhw : (C2, C1, k, k, k)   (PyTorch Conv3d weight layout)
    gamma, beta : (C2,)
    returns : (N, C2, Do, Ho, Wo)
    """
    p = autopad(k, p)
    N, C1, D, H, W = x_ncdhw.shape
    C2 = w_oidhw.shape[0]
    Dp, Hp, Wp = D + 2 * p, H + 2 * p, W + 2 * p
    Do, Ho, Wo = Dp - k + 1, Hp - k + 1, Wp - k + 1
    WpC1 = Wp * C1
    WoC2 = Wo * C2

    # ---- activations: NCDHW -> padded, channels-last, (W, C1) merged on the lane axis
    x = jnp.transpose(x_ncdhw, (0, 2, 3, 4, 1))
    x = jnp.pad(x, ((0, 0), (p, p), (p, p), (p, p), (0, 0)))
    x = x.reshape(N, Dp, Hp, WpC1).astype(jnp.bfloat16)

    # ---- block-Toeplitz weights: fold (kw, C1) into the contraction dimension
    # T[kd, kh, w0*C1 + ci, w*C2 + co] = weight[co, ci, kd, kh, w0 - w]  (0 <= w0-w < k)
    w = jnp.transpose(w_oidhw, (2, 3, 4, 1, 0)).astype(jnp.float32)   # (kD,kH,kW,C1,C2)
    kw_rel = jnp.arange(Wp)[:, None] - jnp.arange(Wo)[None, :]        # (Wp, Wo)
    valid = (kw_rel >= 0) & (kw_rel < k)
    kw_idx = jnp.clip(kw_rel, 0, k - 1)
    T = w[:, :, kw_idx, :, :]                                         # (k,k,Wp,Wo,C1,C2)
    T = T * valid[None, None, :, :, None, None]
    T = jnp.transpose(T, (0, 1, 2, 4, 3, 5)).reshape(k, k, WpC1, WoC2)
    T = T.astype(jnp.bfloat16)

    # ---- pass 1: conv + partial BN stats -------------------------------------------
    conv_out, stats = pl.pallas_call(
        functools.partial(_conv_stats_kernel, k=k, Ho=Ho),
        out_shape=(jax.ShapeDtypeStruct((N, Do, Ho, WoC2), jnp.float32),
                   jax.ShapeDtypeStruct((N, Do, 2, WoC2), jnp.float32)),
        grid=(N, Do, k),
        in_specs=[
            pl.BlockSpec((1, 1, Hp, WpC1), lambda n, d, kd: (n, d + kd, 0, 0)),
            pl.BlockSpec((k, k, WpC1, WoC2), lambda n, d, kd: (0, 0, 0, 0)),
        ],
        out_specs=(
            pl.BlockSpec((1, 1, Ho, WoC2), lambda n, d, kd: (n, d, 0, 0)),
            pl.BlockSpec((1, 1, 2, WoC2), lambda n, d, kd: (n, d, 0, 0)),
        ),
        compiler_params=pltpu.CompilerParams(
            dimension_semantics=("parallel", "parallel", "arbitrary"),
            vmem_limit_bytes=32 * 1024 * 1024),
    )(x, T)

    # ---- BN batch statistics (training mode, biased variance) -----------------------
    s = stats.sum(axis=(0, 1)).reshape(2, Wo, C2).sum(axis=1)          # (2, C2)
    cnt = float(N * Do * Ho * Wo)
    mean = s[0] / cnt
    var = s[1] / cnt - mean * mean
    scale = gamma.astype(jnp.float32) * jax.lax.rsqrt(var + eps)
    shift = beta.astype(jnp.float32) - mean * scale
    scale_l = jnp.tile(scale, Wo).reshape(1, WoC2)                     # channel tiled to lanes
    shift_l = jnp.tile(shift, Wo).reshape(1, WoC2)

    # ---- pass 2: normalize + affine + SiLU (lane-dense elementwise) -----------------
    out = pl.pallas_call(
        _bn_silu_kernel,
        out_shape=jax.ShapeDtypeStruct((N, Do, Ho, WoC2), jnp.float32),
        grid=(N, Do),
        in_specs=[
            pl.BlockSpec((1, 1, Ho, WoC2), lambda n, d: (n, d, 0, 0)),
            pl.BlockSpec((1, WoC2), lambda n, d: (0, 0)),
            pl.BlockSpec((1, WoC2), lambda n, d: (0, 0)),
        ],
        out_specs=pl.BlockSpec((1, 1, Ho, WoC2), lambda n, d: (n, d, 0, 0)),
        compiler_params=pltpu.CompilerParams(
            dimension_semantics=("parallel", "parallel"),
            vmem_limit_bytes=32 * 1024 * 1024),
    )(conv_out, scale_l, shift_l)

    # lane-dense (N, Do, Ho, Wo*C2) -> NCDHW
    out = out.reshape(N, Do, Ho, Wo, C2)
    return jnp.transpose(out, (0, 4, 1, 2, 3))


# --------------------------------------------------------------------------------------
# Pure-JAX reference (matches nn.Conv3d + nn.BatchNorm3d(train) + nn.SiLU)
# --------------------------------------------------------------------------------------
def _reference(x_ncdhw, w_oidhw, gamma, beta, *, k, p=None, eps=1e-5):
    p = autopad(k, p)
    y = jax.lax.conv_general_dilated(
        x_ncdhw.astype(jnp.float32), w_oidhw.astype(jnp.float32),
        window_strides=(1, 1, 1), padding=[(p, p)] * 3,
        dimension_numbers=("NCDHW", "OIDHW", "NCDHW"))
    mean = jnp.mean(y, axis=(0, 2, 3, 4), keepdims=True)
    var = jnp.mean((y - mean) ** 2, axis=(0, 2, 3, 4), keepdims=True)
    yn = (y - mean) * jax.lax.rsqrt(var + eps)
    yn = yn * gamma.reshape(1, -1, 1, 1, 1) + beta.reshape(1, -1, 1, 1, 1)
    return yn * jax.nn.sigmoid(yn)


if __name__ == "__main__":
    # Conv(c1=4, c2=8, k=3) on a small NCDHW volume.
    N, C1, C2, D, H, W, K = 2, 4, 8, 16, 16, 16, 3

    key = jax.random.PRNGKey(0)
    kx, kw, kg, kb = jax.random.split(key, 4)
    x = jax.random.normal(kx, (N, C1, D, H, W), dtype=jnp.float32)
    w = jax.random.normal(kw, (C2, C1, K, K, K), dtype=jnp.float32) * 0.1
    gamma = 1.0 + 0.1 * jax.random.normal(kg, (C2,), dtype=jnp.float32)
    beta = 0.1 * jax.random.normal(kb, (C2,), dtype=jnp.float32)

    out = jax.block_until_ready(conv_bn_silu(x, w, gamma, beta, k=K))
    ref = _reference(x, w, gamma, beta, k=K)
    assert out.shape == ref.shape == (N, C2, D, H, W)
    # bf16 matmul inputs (f32 accumulation) -> slightly looser tolerance than pure-f32.
    assert jnp.allclose(out, ref, rtol=2e-2, atol=2e-2), (
        float(jnp.max(jnp.abs(out - ref))))

    # k=1 (the Conv default) exercises the same kernels with no spatial halo.
    w1 = jax.random.normal(kw, (C2, C1, 1, 1, 1), dtype=jnp.float32) * 0.1
    out1 = jax.block_until_ready(conv_bn_silu(x, w1, gamma, beta, k=1))
    ref1 = _reference(x, w1, gamma, beta, k=1)
    assert jnp.allclose(out1, ref1, rtol=2e-2, atol=2e-2), (
        float(jnp.max(jnp.abs(out1 - ref1))))

    print("KERNEL_OK")
</pallas_src>

<mosaic_0001>
module attributes {stable_mosaic.version = 11 : i64} {
  func.func @_conv_stats_kernel(%arg0: i32, %arg1: i32, %arg2: i32, %arg3: memref<1x1x18x72xbf16, #tpu.memory_space<vmem>>, %arg4: memref<3x3x72x128xbf16, #tpu.memory_space<vmem>>, %arg5: memref<1x1x16x128xf32, #tpu.memory_space<vmem>>, %arg6: memref<1x1x2x128xf32, #tpu.memory_space<vmem>>) attributes {dimension_semantics = [#tpu.dimension_semantics<parallel>, #tpu.dimension_semantics<parallel>, #tpu.dimension_semantics<arbitrary>], iteration_bounds = array<i64: 2, 16, 3>, scalar_prefetch = 0 : i64, scratch_operands = 0 : i64, tpu.core_type = #tpu.core_type<tc>, window_params = [{transform_indices = @transform_0, window_bounds = array<i64: 1, 1, 18, 72>}, {pipeline_mode = #tpu.pipeline_mode<synchronous>, transform_indices = @transform_1, window_bounds = array<i64: 3, 3, 72, 128>}, {transform_indices = @transform_2, window_bounds = array<i64: 1, 1, 16, 128>}, {transform_indices = @transform_3, window_bounds = array<i64: 1, 1, 2, 128>}]} {
    %c0_i32 = arith.constant 0 : i32
    %0 = arith.cmpi eq, %arg2, %c0_i32 : i32
    %1 = arith.extui %0 : i1 to i32
    %c0_i32_0 = arith.constant 0 : i32
    %2 = arith.cmpi ne, %1, %c0_i32_0 : i32
    scf.if %2 {
      %cst_18 = arith.constant 0.000000e+00 : f32
      %31 = vector.broadcast %cst_18 : f32 to vector<1x1x16x128xf32>
      %c0_19 = arith.constant 0 : index
      %c0_20 = arith.constant 0 : index
      %c0_21 = arith.constant 0 : index
      %c0_22 = arith.constant 0 : index
      %32 = vector.load %arg5[%c0_19, %c0_20, %c0_21, %c0_22] : memref<1x1x16x128xf32, #tpu.memory_space<vmem>>, vector<1x1x16x128xf32>
      tpu.vector_store %arg5[%c0_19, %c0_20, %c0_21, %c0_22], %31 {strides = array<i32>} : memref<1x1x16x128xf32, #tpu.memory_space<vmem>>, vector<1x1x16x128xf32>,
    } else {
    }
    %c0 = arith.constant 0 : index
    %c0_1 = arith.constant 0 : index
    %c0_2 = arith.constant 0 : index
    %c0_3 = arith.constant 0 : index
    %3 = vector.load %arg3[%c0, %c0_1, %c0_2, %c0_3] : memref<1x1x18x72xbf16, #tpu.memory_space<vmem>>, vector<1x1x18x72xbf16>
    %4 = vector.shape_cast %3 : vector<1x1x18x72xbf16> to vector<18x72xbf16>
    %5 = arith.index_cast %arg2 : i32 to index
    %c0_4 = arith.constant 0 : index
    %c0_5 = arith.constant 0 : index
    %c0_6 = arith.constant 0 : index
    %6 = vector.load %arg4[%5, %c0_4, %c0_5, %c0_6] : memref<3x3x72x128xbf16, #tpu.memory_space<vmem>>, vector<1x3x72x128xbf16>
    %7 = vector.shape_cast %6 : vector<1x3x72x128xbf16> to vector<3x72x128xbf16>
    %c0_7 = arith.constant 0 : index
    %c0_8 = arith.constant 0 : index
    %c0_9 = arith.constant 0 : index
    %c0_10 = arith.constant 0 : index
    %8 = vector.load %arg5[%c0_7, %c0_8, %c0_9, %c0_10] : memref<1x1x16x128xf32, #tpu.memory_space<vmem>>, vector<1x1x16x128xf32>
    %9 = vector.shape_cast %8 : vector<1x1x16x128xf32> to vector<16x128xf32>
    %10 = vector.extract_strided_slice %4 {offsets = [0, 0], sizes = [16, 72], strides = [1, 1]} : vector<18x72xbf16> to vector<16x72xbf16>
    %11 = vector.extract_strided_slice %7 {offsets = [0, 0, 0], sizes = [1, 72, 128], strides = [1, 1, 1]} : vector<3x72x128xbf16> to vector<1x72x128xbf16>
    %12 = vector.shape_cast %11 : vector<1x72x128xbf16> to vector<72x128xbf16>
    %cst = arith.constant dense<0.000000e+00> : vector<16x128xf32>
    %13 = tpu.matmul %10, %12, %cst {dimension_numbers = #tpu.dot_dimension_numbers<[1], [0], [0], [1], [0, 0, 1, 1], [], []>} : vector<16x72xbf16>, vector<72x128xbf16>, vector<16x128xf32> -> vector<16x128xf32>
    %14 = arith.addf %9, %13 : vector<16x128xf32>
    %15 = vector.extract_strided_slice %4 {offsets = [1, 0], sizes = [16, 72], strides = [1, 1]} : vector<18x72xbf16> to vector<16x72xbf16>
    %16 = vector.extract_strided_slice %7 {offsets = [1, 0, 0], sizes = [1, 72, 128], strides = [1, 1, 1]} : vector<3x72x128xbf16> to vector<1x72x128xbf16>
    %17 = vector.shape_cast %16 : vector<1x72x128xbf16> to vector<72x128xbf16>
    %cst_11 = arith.constant dense<0.000000e+00> : vector<16x128xf32>
    %18 = tpu.matmul %15, %17, %cst_11 {dimension_numbers = #tpu.dot_dimension_numbers<[1], [0], [0], [1], [0, 0, 1, 1], [], []>} : vector<16x72xbf16>, vector<72x128xbf16>, vector<16x128xf32> -> vector<16x128xf32>
    %19 = arith.addf %14, %18 : vector<16x128xf32>
    %20 = vector.extract_strided_slice %4 {offsets = [2, 0], sizes = [16, 72], strides = [1, 1]} : vector<18x72xbf16> to vector<16x72xbf16>
    %21 = vector.extract_strided_slice %7 {offsets = [2, 0, 0], sizes = [1, 72, 128], strides = [1, 1, 1]} : vector<3x72x128xbf16> to vector<1x72x128xbf16>
    %22 = vector.shape_cast %21 : vector<1x72x128xbf16> to vector<72x128xbf16>
    %cst_12 = arith.constant dense<0.000000e+00> : vector<16x128xf32>
    %23 = tpu.matmul %20, %22, %cst_12 {dimension_numbers = #tpu.dot_dimension_numbers<[1], [0], [0], [1], [0, 0, 1, 1], [], []>} : vector<16x72xbf16>, vector<72x128xbf16>, vector<16x128xf32> -> vector<16x128xf32>
    %24 = arith.addf %19, %23 : vector<16x128xf32>
    %c0_13 = arith.constant 0 : index
    %c0_14 = arith.constant 0 : index
    %c0_15 = arith.constant 0 : index
    %c0_16 = arith.constant 0 : index
    %25 = vector.load %arg5[%c0_13, %c0_14, %c0_15, %c0_16] : memref<1x1x16x128xf32, #tpu.memory_space<vmem>>, vector<1x1x16x128xf32>
    %26 = vector.shape_cast %25 : vector<1x1x16x128xf32> to vector<16x128xf32>
    %27 = vector.shape_cast %24 : vector<16x128xf32> to vector<1x1x16x128xf32>
    tpu.vector_store %arg5[%c0_13, %c0_14, %c0_15, %c0_16], %27 {strides = array<i32>} : memref<1x1x16x128xf32, #tpu.memory_space<vmem>>, vector<1x1x16x128xf32>,
    %c2_i32 = arith.constant 2 : i32
    %28 = arith.cmpi eq, %arg2, %c2_i32 : i32
    %29 = arith.extui %28 : i1 to i32
    %c0_i32_17 = arith.constant 0 : i32
    %30 = arith.cmpi ne, %29, %c0_i32_17 : i32
    scf.if %30 {
      %cst_18 = arith.constant dense<0.000000e+00> : vector<128xf32>
      %31 = vector.multi_reduction <add>, %24, %cst_18 [0] : vector<16x128xf32> to vector<128xf32>
      %32 = vector.shape_cast %31 : vector<128xf32> to vector<1x128xf32>
      %33 = arith.mulf %24, %24 : vector<16x128xf32>
      %cst_19 = arith.constant dense<0.000000e+00> : vector<128xf32>
      %34 = vector.multi_reduction <add>, %33, %cst_19 [0] : vector<16x128xf32> to vector<128xf32>
      %35 = vector.shape_cast %34 : vector<128xf32> to vector<1x128xf32>
      %36 = tpu.concatenate %32, %35 in 0 : vector<1x128xf32>, vector<1x128xf32> -> vector<2x128xf32>
      %c0_20 = arith.constant 0 : index
      %c0_21 = arith.constant 0 : index
      %c0_22 = arith.constant 0 : index
      %c0_23 = arith.constant 0 : index
      %37 = vector.load %arg6[%c0_20, %c0_21, %c0_22, %c0_23] : memref<1x1x2x128xf32, #tpu.memory_space<vmem>>, vector<1x1x2x128xf32>
      %38 = vector.shape_cast %37 : vector<1x1x2x128xf32> to vector<2x128xf32>
      %39 = vector.shape_cast %36 : vector<2x128xf32> to vector<1x1x2x128xf32>
      tpu.vector_store %arg6[%c0_20, %c0_21, %c0_22, %c0_23], %39 {strides = array<i32>} : memref<1x1x2x128xf32, #tpu.memory_space<vmem>>, vector<1x1x2x128xf32>,
    } else {
    }
    return
  }
  func.func @transform_0(%arg0: i32, %arg1: i32, %arg2: i32) -> (i32, i32, i32, i32) {
    %0 = arith.addi %arg1, %arg2 : i32
    %c0_i32 = arith.constant 0 : i32
    %c0_i32_0 = arith.constant 0 : i32
    %c0_i32_1 = arith.constant 0 : i32
    return %arg0, %0, %c0_i32, %c0_i32_0 : i32, i32, i32, i32
  }
  func.func @transform_1(%arg0: i32, %arg1: i32, %arg2: i32) -> (i32, i32, i32, i32) {
    %c0_i32 = arith.constant 0 : i32
    %c0_i32_0 = arith.constant 0 : i32
    %c0_i32_1 = arith.constant 0 : i32
    %c0_i32_2 = arith.constant 0 : i32
    %c0_i32_3 = arith.constant 0 : i32
    return %c0_i32, %c0_i32_0, %c0_i32_1, %c0_i32_2 : i32, i32, i32, i32
  }
  func.func @transform_2(%arg0: i32, %arg1: i32, %arg2: i32) -> (i32, i32, i32, i32) {
    %c0_i32 = arith.constant 0 : i32
    %c0_i32_0 = arith.constant 0 : i32
    %c0_i32_1 = arith.constant 0 : i32
    return %arg0, %arg1, %c0_i32, %c0_i32_0 : i32, i32, i32, i32
  }
  func.func @transform_3(%arg0: i32, %arg1: i32, %arg2: i32) -> (i32, i32, i32, i32) {
    %c0_i32 = arith.constant 0 : i32
    %c0_i32_0 = arith.constant 0 : i32
    %c0_i32_1 = arith.constant 0 : i32
    return %arg0, %arg1, %c0_i32, %c0_i32_0 : i32, i32, i32, i32
  }
}

module attributes {stable_mosaic.version = 11 : i64} {
  func.func @_bn_silu_kernel(%arg0: i32, %arg1: i32, %arg2: memref<1x1x16x128xf32, #tpu.memory_space<vmem>>, %arg3: memref<1x128xf32, #tpu.memory_space<vmem>>, %arg4: memref<1x128xf32, #tpu.memory_space<vmem>>, %arg5: memref<1x1x16x128xf32, #tpu.memory_space<vmem>>) attributes {dimension_semantics = [#tpu.dimension_semantics<parallel>, #tpu.dimension_semantics<parallel>], iteration_bounds = array<i64: 2, 16>, scalar_prefetch = 0 : i64, scratch_operands = 0 : i64, tpu.core_type = #tpu.core_type<tc>, window_params = [{transform_indices = @transform_0, window_bounds = array<i64: 1, 1, 16, 128>}, {pipeline_mode = #tpu.pipeline_mode<synchronous>, transform_indices = @transform_1, window_bounds = array<i64: 1, 128>}, {pipeline_mode = #tpu.pipeline_mode<synchronous>, transform_indices = @transform_2, window_bounds = array<i64: 1, 128>}, {transform_indices = @transform_3, window_bounds = array<i64: 1, 1, 16, 128>}]} {
    %c0 = arith.constant 0 : index
    %c0_0 = arith.constant 0 : index
    %c0_1 = arith.constant 0 : index
    %c0_2 = arith.constant 0 : index
    %0 = vector.load %arg2[%c0, %c0_0, %c0_1, %c0_2] : memref<1x1x16x128xf32, #tpu.memory_space<vmem>>, vector<1x1x16x128xf32>
    %1 = vector.shape_cast %0 : vector<1x1x16x128xf32> to vector<16x128xf32>
    %c0_3 = arith.constant 0 : index
    %c0_4 = arith.constant 0 : index
    %2 = vector.load %arg3[%c0_3, %c0_4] : memref<1x128xf32, #tpu.memory_space<vmem>>, vector<1x128xf32>
    %3 = vector.broadcast %2 : vector<1x128xf32> to vector<16x128xf32>
    %4 = arith.mulf %1, %3 : vector<16x128xf32>
    %c0_5 = arith.constant 0 : index
    %c0_6 = arith.constant 0 : index
    %5 = vector.load %arg4[%c0_5, %c0_6] : memref<1x128xf32, #tpu.memory_space<vmem>>, vector<1x128xf32>
    %6 = vector.broadcast %5 : vector<1x128xf32> to vector<16x128xf32>
    %7 = arith.addf %4, %6 : vector<16x128xf32>
    %8 = arith.negf %7 : vector<16x128xf32>
    %9 = math.exp %8 : vector<16x128xf32>
    %cst = arith.constant 1.000000e+00 : f32
    %10 = vector.broadcast %cst : f32 to vector<16x128xf32>
    %11 = arith.addf %10, %9 : vector<16x128xf32>
    %12 = arith.divf %10, %11 : vector<16x128xf32>
    %13 = arith.mulf %7, %12 : vector<16x128xf32>
    %c0_7 = arith.constant 0 : index
    %c0_8 = arith.constant 0 : index
    %c0_9 = arith.constant 0 : index
    %c0_10 = arith.constant 0 : index
    %14 = vector.load %arg5[%c0_7, %c0_8, %c0_9, %c0_10] : memref<1x1x16x128xf32, #tpu.memory_space<vmem>>, vector<1x1x16x128xf32>
    %15 = vector.shape_cast %14 : vector<1x1x16x128xf32> to vector<16x128xf32>
    %16 = vector.shape_cast %13 : vector<16x128xf32> to vector<1x1x16x128xf32>
    tpu.vector_store %arg5[%c0_7, %c0_8, %c0_9, %c0_10], %16 {strides = array<i32>} : memref<1x1x16x128xf32, #tpu.memory_space<vmem>>, vector<1x1x16x128xf32>,
    return
  }
  func.func @transform_0(%arg0: i32, %arg1: i32) -> (i32, i32, i32, i32) {
    %c0_i32 = arith.constant 0 : i32
    %c0_i32_0 = arith.constant 0 : i32
    %c0_i32_1 = arith.constant 0 : i32
    return %arg0, %arg1, %c0_i32, %c0_i32_0 : i32, i32, i32, i32
  }
  func.func @transform_1(%arg0: i32, %arg1: i32) -> (i32, i32) {
    %c0_i32 = arith.constant 0 : i32
    %c0_i32_0 = arith.constant 0 : i32
    %c0_i32_1 = arith.constant 0 : i32
    return %c0_i32, %c0_i32_0 : i32, i32
  }
  func.func @transform_2(%arg0: i32, %arg1: i32) -> (i32, i32) {
    %c0_i32 = arith.constant 0 : i32
    %c0_i32_0 = arith.constant 0 : i32
    %c0_i32_1 = arith.constant 0 : i32
    return %c0_i32, %c0_i32_0 : i32, i32
  }
  func.func @transform_3(%arg0: i32, %arg1: i32) -> (i32, i32, i32, i32) {
    %c0_i32 = arith.constant 0 : i32
    %c0_i32_0 = arith.constant 0 : i32
    %c0_i32_1 = arith.constant 0 : i32
    return %arg0, %arg1, %c0_i32, %c0_i32_0 : i32, i32, i32, i32
  }
}

</mosaic_0001>

<llo_original>
// kernel: tile.13
$region0: #{tile.13}
  #allocation0 [shape = 's32[1]{0}', space=sflag, size = 0x4, scoped, tag = 'scoped memory for tile.13']
  %s0 = inlined_call_operand.vmem [shape: f32[8], index: 0, kind: input, shape index: {}]
  %s1 = inlined_call_operand.vmem [shape: f32[16,8], index: 1, kind: output, shape index: {}]
  // Predicated region
  $region2: #{tile.13} parent=0 // pred_check
    _
  $region3: #{tile.13} parent=0 // pred_check_branch
    %3 = sbr.rel (0) target = $region5
  $region4: #{tile.13} parent=0 // pred_region
    _
  $region5: #{tile.13} parent=0 // pred_fallthru
    _
  %v4 = vld [vmem:[%s0] ss:$0 sm:$0xff]
  %5 = vst [vmem:[%s1] sm:$0xff] %v4
  %s6 = scalar_lea.vmem %s1, 8
  %7 = vst [vmem:[%s6] sm:$0xff] %v4

// kernel: tile.14
$region0: #{tile.14}
  %s0 = inlined_call_operand.vmem [shape: f32[16,8], index: 0, kind: input, shape index: {}]
  %s1 = inlined_call_operand.vmem [shape: f32[1,128], index: 1, kind: output, shape index: {}]
  $region1: #{tile.14} parent=0
    #allocation0 [shape = 'u8[4096]{0}', space=vmem, size = 0x1000, scoped, tag = 'scoped mem for output reshape']
    %v2 = vld [vmem:[%s0] sm:$0x1]
    %vm3 = vcmask 64512
    %4 = vst.msk [vmem:[#allocation0] sm:$0x1] %vm3, %v2
    %s5 = scalar_lea.vmem %s0, 15
    %v6 = vld [vmem:[%s5] sm:$0x1]
    %7 = vrot.lane.b32.xlu0 %v6, 120
    %v8 = vpop.permute.xlu0 %7
    %vm9 = vcmask 1048512
    %10 = vst.msk [vmem:[#allocation0] sm:$0x1] %vm9, %v8
    %s11 = scalar_lea.vmem %s0, 14
    %v12 = vld [vmem:[%s11] sm:$0x1]
    %13 = vrot.lane.b32.xlu0 %v12, 112
    %v14 = vpop.permute.xlu0 %13
    %vm15 = vcmask 982912
    %16 = vst.msk [vmem:[#allocation0] sm:$0x1] %vm15, %v14
    %s17 = scalar_lea.vmem %s0, 13
    %v18 = vld [vmem:[%s17] sm:$0x1]
    %19 = vrot.lane.b32.xlu0 %v18, 104
    %v20 = vpop.permute.xlu0 %19
    %vm21 = vcmask 917312
    %22 = vst.msk [vmem:[#allocation0] sm:$0x1] %vm21, %v20
    %s23 = scalar_lea.vmem %s0, 12
    %v24 = vld [vmem:[%s23] sm:$0x1]
    %25 = vrot.lane.b32.xlu0 %v24, 96
    %v26 = vpop.permute.xlu0 %25
    %vm27 = vcmask 851712
    %28 = vst.msk [vmem:[#allocation0] sm:$0x1] %vm27, %v26
    %s29 = scalar_lea.vmem %s0, 11
    %v30 = vld [vmem:[%s29] sm:$0x1]
    %31 = vrot.lane.b32.xlu0 %v30, 88
    %v32 = vpop.permute.xlu0 %31
    %vm33 = vcmask 786112
    %34 = vst.msk [vmem:[#allocation0] sm:$0x1] %vm33, %v32
    %s35 = scalar_lea.vmem %s0, 10
    %v36 = vld [vmem:[%s35] sm:$0x1]
    %37 = vrot.lane.b32.xlu0 %v36, 80
    %v38 = vpop.permute.xlu0 %37
    %vm39 = vcmask 720512
    %40 = vst.msk [vmem:[#allocation0] sm:$0x1] %vm39, %v38
    %s41 = scalar_lea.vmem %s0, 9
    %v42 = vld [vmem:[%s41] sm:$0x1]
    %43 = vrot.lane.b32.xlu0 %v42, 72
    %v44 = vpop.permute.xlu0 %43
    %vm45 = vcmask 654912
    %46 = vst.msk [vmem:[#allocation0] sm:$0x1] %vm45, %v44
    %s47 = scalar_lea.vmem %s0, 8
    %v48 = vld [vmem:[%s47] sm:$0x1]
    %49 = vrot.lane.b32.xlu0 %v48, 64
    %v50 = vpop.permute.xlu0 %49
    %vm51 = vcmask 589312
    %52 = vst.msk [vmem:[#allocation0] sm:$0x1] %vm51, %v50
    %s53 = scalar_lea.vmem %s0, 7
    %v54 = vld [vmem:[%s53] sm:$0x1]
    %55 = vrot.lane.b32.xlu0 %v54, 56
    %v56 = vpop.permute.xlu0 %55
    %vm57 = vcmask 523712
    %58 = vst.msk [vmem:[#allocation0] sm:$0x1] %vm57, %v56
    %s59 = scalar_lea.vmem %s0, 6
    %v60 = vld [vmem:[%s59] sm:$0x1]
    %61 = vrot.lane.b32.xlu0 %v60, 48
    %v62 = vpop.permute.xlu0 %61
    %vm63 = vcmask 458112
    %64 = vst.msk [vmem:[#allocation0] sm:$0x1] %vm63, %v62
    %s65 = scalar_lea.vmem %s0, 5
    %v66 = vld [vmem:[%s65] sm:$0x1]
    %67 = vrot.lane.b32.xlu0 %v66, 40
    %v68 = vpop.permute.xlu0 %67
    %vm69 = vcmask 392512
    %70 = vst.msk [vmem:[#allocation0] sm:$0x1] %vm69, %v68
    %s71 = scalar_lea.vmem %s0, 4
    %v72 = vld [vmem:[%s71] sm:$0x1]
    %73 = vrot.lane.b32.xlu0 %v72, 32
    %v74 = vpop.permute.xlu0 %73
    %vm75 = vcmask 326912
    %76 = vst.msk [vmem:[#allocation0] sm:$0x1] %vm75, %v74
    %s77 = scalar_lea.vmem %s0, 3
    %v78 = vld [vmem:[%s77] sm:$0x1]
    %79 = vrot.lane.b32.xlu0 %v78, 24
    %v80 = vpop.permute.xlu0 %79
    %vm81 = vcmask 261312
    %82 = vst.msk [vmem:[#allocation0] sm:$0x1] %vm81, %v80
    %s83 = scalar_lea.vmem %s0, 2
    %v84 = vld [vmem:[%s83] sm:$0x1]
    %85 = vrot.lane.b32.xlu0 %v84, 16
    %v86 = vpop.permute.xlu0 %85
    %vm87 = vcmask 195712
    %88 = vst.msk [vmem:[#allocation0] sm:$0x1] %vm87, %v86
    %s89 = scalar_lea.vmem %s0, 1
    %v90 = vld [vmem:[%s89] sm:$0x1]
    %91 = vrot.lane.b32.xlu0 %v90, 8
    %v92 = vpop.permute.xlu0 %91
    %vm93 = vcmask 130112
    %94 = vst.msk [vmem:[#allocation0] sm:$0x1] %vm93, %v92
    %s96 = ssub.s32 2, 1
    %v97 = vld [vmem:[#allocation0] sm:%s96]
    %s99 = ssub.s32 2, 1
    %100 = vst [vmem:[%s1] sm:%s99] %v97

// kernel: conv_bn_silu.3
$region0: #{conv_bn_silu.3}
  #allocation0 [shape = 'u32[]', space=smem, size = 0x4, offset = 0x4, fixed_abs, tag = 'smem constant byte address 0x4 - core index']
  #allocation1 [shape = 'u32[72,128]{1,0:T(1,128)}', space=vmem, size = 0x9000, scoped, tag = 'internal scratch']
  %s0 = inlined_call_operand.vmem [shape: f32[2,16,16,128], index: 0, kind: input, shape index: {}]
  %s1 = inlined_call_operand.vmem [shape: f32[1,128], index: 1, kind: input, shape index: {}]
  %s2 = inlined_call_operand.vmem [shape: f32[1,128], index: 2, kind: input, shape index: {}]
  %s3 = inlined_call_operand.vmem [shape: f32[2,16,16,128], index: 3, kind: output, shape index: {}]
  %s4 = sld [smem:[#allocation0]]
  $region45: #{conv_bn_silu.3} parent=0
    _
  %s6 = ssub.s32 1, %s4
  %s7 = scalar_select 0, %s6, %s4
  loop: start=0, step=1, limit=34
  $region2: #{conv_bn_silu.3} parent=0 // loop_pre_header
    _
  $region3: #{conv_bn_silu.3} parent=0 // loop_header
    %s9 = sphi 0, %s13
    %p10 = scmp.ge.s32.totalorder %s9, 34
    %s16 = sphi 0, %s28
    %s17 = sphi 0, %s24
    %s18 = sphi 0, %s16
    %s19 = sphi 0, %s17
    %s20 = sphi 0, %s18
    %s21 = sphi 0, %s19
    %s33 = sphi 0, %s35
    %s36 = sphi 0, %s33
    %s37 = sphi 0, %s36
    %s53 = sphi 0, %s37
    %s57 = sphi 0, %s57
    %s59 = sphi 0, %s57
    %s60 = sphi 0, %s59
    %s74 = sphi 0, %s60
    %s78 = sphi 0, %s78
    %s80 = sphi 0, %s78
    %s81 = sphi 0, %s80
    %s95 = sphi 0, %s81
    %s103 = sphi 0, %s105
    %s106 = sphi 0, %s103
    %s107 = sphi 0, %s106
    %s123 = sphi 0, %s107
  $region4: #{conv_bn_silu.3} parent=0 // loop_header_branch
    %12 = sbr.rel (%p10) target = $region8
  $region5: #{conv_bn_silu.3} parent=0 // loop_body
    %s14 = ssub.s32 %s9, 1
    %s15 = ssub.s32 %s9, 2
    %s22 = sadd.s32 1, %s17
    %p23 = scmp.ge.s32.totalorder %s22, 16
    %s24 = scalar_select %p23, 0, %s22
    %s25 = sadd.s32 1, %s16
    %s26 = scalar_select %p23, %s25, %s16
    %p27 = scmp.ge.s32.totalorder %s26, 2
    %s28 = scalar_select %p27, 0, %s26
    %s29 = ssub.s32 %s16, %s28
    %s30 = ssub.s32 %s17, %s24
    %s31 = sor.u32 %s29, %s30
    %p32 = scmp.eq.s32.totalorder %s31, 0
    %s34 = sadd.s32 %s33, 1
    %s35 = scalar_select %p32, %s33, %s34
    %p38 = pneg %p32
    %p39 = scmp.eq.s32.totalorder %s9, 31
    %p40 = por %p38, %p39
    %p41 = scmp.ne.s32.totalorder %s33, %s36
    %p42 = scmp.eq.s32.totalorder %s9, 0
    %p43 = por %p41, %p42
    %p44 = scmp.ne.s32.totalorder %s33, %s36
    %p45 = scmp.eq.s32.totalorder %s14, 31
    %p46 = por %p44, %p45
    %p47 = scmp.ne.s32.totalorder %s36, %s37
    %p48 = scmp.eq.s32.totalorder %s14, 0
    %p49 = por %p47, %p48
    %p50 = scmp.ne.s32.totalorder %s36, %s37
    %p51 = scmp.eq.s32.totalorder %s15, 31
    %p52 = por %p50, %p51
    %p54 = scmp.ne.s32.totalorder %s37, %s53
    %p55 = scmp.eq.s32.totalorder %s15, 0
    %p56 = por %p54, %p55
    %s58 = sadd.s32 %s57, 1
    %p61 = scmp.eq.s32.totalorder %s9, 31
    %p62 = scmp.ne.s32.totalorder %s57, %s59
    %p63 = scmp.eq.s32.totalorder %s9, 0
    %p64 = por %p62, %p63
    %p65 = scmp.ne.s32.totalorder %s57, %s59
    %p66 = scmp.eq.s32.totalorder %s14, 31
    %p67 = por %p65, %p66
    %p68 = scmp.ne.s32.totalorder %s59, %s60
    %p69 = scmp.eq.s32.totalorder %s14, 0
    %p70 = por %p68, %p69
    %p71 = scmp.ne.s32.totalorder %s59, %s60
    %p72 = scmp.eq.s32.totalorder %s15, 31
    %p73 = por %p71, %p72
    %p75 = scmp.ne.s32.totalorder %s60, %s74
    %p76 = scmp.eq.s32.totalorder %s15, 0
    %p77 = por %p75, %p76
    %s79 = sadd.s32 %s78, 1
    %p82 = scmp.eq.s32.totalorder %s9, 31
    %p83 = scmp.ne.s32.totalorder %s78, %s80
    %p84 = scmp.eq.s32.totalorder %s9, 0
    %p85 = por %p83, %p84
    %p86 = scmp.ne.s32.totalorder %s78, %s80
    %p87 = scmp.eq.s32.totalorder %s14, 31
    %p88 = por %p86, %p87
    %p89 = scmp.ne.s32.totalorder %s80, %s81
    %p90 = scmp.eq.s32.totalorder %s14, 0
    %p91 = por %p89, %p90
    %p92 = scmp.ne.s32.totalorder %s80, %s81
    %p93 = scmp.eq.s32.totalorder %s15, 31
    %p94 = por %p92, %p93
    %p96 = scmp.ne.s32.totalorder %s81, %s95
    %p97 = scmp.eq.s32.totalorder %s15, 0
    %p98 = por %p96, %p97
    %s99 = ssub.s32 %s16, %s28
    %s100 = ssub.s32 %s17, %s24
    %s101 = sor.u32 %s99, %s100
    %p102 = scmp.eq.s32.totalorder %s101, 0
    %s104 = sadd.s32 %s103, 1
    %s105 = scalar_select %p102, %s103, %s104
    %p108 = pneg %p102
    %p109 = scmp.eq.s32.totalorder %s9, 31
    %p110 = por %p108, %p109
    %p111 = scmp.ne.s32.totalorder %s103, %s106
    %p112 = scmp.eq.s32.totalorder %s9, 0
    %p113 = por %p111, %p112
    %p114 = scmp.ne.s32.totalorder %s103, %s106
    %p115 = scmp.eq.s32.totalorder %s14, 31
    %p116 = por %p114, %p115
    %p117 = scmp.ne.s32.totalorder %s106, %s107
    %p118 = scmp.eq.s32.totalorder %s14, 0
    %p119 = por %p117, %p118
    %p120 = scmp.ne.s32.totalorder %s106, %s107
    %p121 = scmp.eq.s32.totalorder %s15, 31
    %p122 = por %p120, %p121
    %p124 = scmp.ne.s32.totalorder %s107, %s123
    %p125 = scmp.eq.s32.totalorder %s15, 0
    %p126 = por %p124, %p125
    %p127 = scmp.le.s32.totalorder 1, %s9
    %p128 = scmp.lt.s32.totalorder %s9, 33
    %p129 = pnand %p127, %p128
    %p130 = pneg %p129
    // Predicated region
    $region9: #{conv_bn_silu.3} parent=5 // pred_check
      _
    $region10: #{conv_bn_silu.3} parent=5 // pred_check_branch
      %132 = sbr.rel (%p129) target = $region12
    $region11: #{conv_bn_silu.3} parent=5 // pred_region
      %s133 = ssub.s32 %s9, 1
      // Predicated region
      $region13: #{conv_bn_silu.3} parent=11 // pred_check
        %p134 = pneg %p70
      $region14: #{conv_bn_silu.3} parent=11 // pred_check_branch
        %136 = sbr.rel (%p134) target = $region16
      $region15: #{conv_bn_silu.3} parent=11 // pred_region
        _
      $region16: #{conv_bn_silu.3} parent=11 // pred_fallthru
        _
      // Predicated region
      $region17: #{conv_bn_silu.3} parent=11 // pred_check
        %p137 = pneg %p91
      $region18: #{conv_bn_silu.3} parent=11 // pred_check_branch
        %139 = sbr.rel (%p137) target = $region20
      $region19: #{conv_bn_silu.3} parent=11 // pred_region
        _
      $region20: #{conv_bn_silu.3} parent=11 // pred_fallthru
        _
    $region12: #{conv_bn_silu.3} parent=5 // pred_fallthru
      _
    %p140 = scmp.lt.s32.totalorder %s9, 32
    // Predicated region
    $region21: #{conv_bn_silu.3} parent=5 // pred_check
      %p141 = pneg %p140
    $region22: #{conv_bn_silu.3} parent=5 // pred_check_branch
      %143 = sbr.rel (%p141) target = $region24
    $region23: #{conv_bn_silu.3} parent=5 // pred_region
      // Predicated region
      $region25: #{conv_bn_silu.3} parent=23 // pred_check
        %p144 = pneg %p43
      $region26: #{conv_bn_silu.3} parent=23 // pred_check_branch
        %146 = sbr.rel (%p144) target = $region28
      $region27: #{conv_bn_silu.3} parent=23 // pred_region
        %p147 = scmp.lt.s32.totalorder %s16, 1
        %s148 = scalar_select %p147, %s16, 1
        %p149 = scmp.lt.s32.totalorder %s17, 15
        %s150 = scalar_select %p149, %s17, 15
        %s151 = smul.addr %s150, 2
        %s152 = smul.addr %s148, 32
        %s153 = sadd.s32 %s151, %s152
        %s154 = smul.addr %s153, 8
        %s155 = scalar_lea.vmem %s0, %s154
      $region28: #{conv_bn_silu.3} parent=23 // pred_fallthru
        _
    $region24: #{conv_bn_silu.3} parent=5 // pred_fallthru
      _
    %p156 = scmp.le.s32.totalorder 1, %s9
    %p157 = scmp.lt.s32.totalorder %s9, 33
    %p158 = pnand %p156, %p157
    %p159 = pneg %p158
    // Predicated region
    $region29: #{conv_bn_silu.3} parent=5 // pred_check
      _
    $region30: #{conv_bn_silu.3} parent=5 // pred_check_branch
      %161 = sbr.rel (%p158) target = $region32
    $region31: #{conv_bn_silu.3} parent=5 // pred_region
      %s162 = ssub.s32 %s9, 1
      %p163 = scmp.lt.s32.totalorder %s18, 1
      %s164 = scalar_select %p163, %s18, 1
      %p165 = scmp.lt.s32.totalorder %s19, 15
      %s166 = scalar_select %p165, %s19, 15
      %s167 = smul.addr %s166, 2
      %s168 = smul.addr %s164, 32
      %s169 = sadd.s32 %s167, %s168
      %s170 = smul.addr %s169, 8
      %s171 = scalar_lea.vmem %s0, %s170
      %p172 = pneg %p49
      %p173 = pneg %p46
      %p174 = pneg %p70
      %p175 = pneg %p67
      %p176 = pneg %p91
      %p177 = pneg %p88
      %p178 = pneg %p119
      %p179 = pneg %p116
      %p180 = scmp.lt.s32.totalorder %s18, 1
      %s181 = scalar_select %p180, %s18, 1
      %p182 = scmp.lt.s32.totalorder %s19, 15
      %s183 = scalar_select %p182, %s19, 15
      %s184 = smul.addr %s183, 2
      %s185 = smul.addr %s181, 32
      %s186 = sadd.s32 %s184, %s185
      %s187 = smul.addr %s186, 8
      %s188 = scalar_lea.vmem %s3, %s187
      %p189 = scmp.lt.s32.totalorder %s18, 1
      %s190 = scalar_select %p189, %s18, 1
      %p191 = scmp.lt.s32.totalorder %s19, 15
      %s192 = scalar_select %p191, %s19, 15
      %s193 = smul.addr %s192, 2
      %s194 = smul.addr %s190, 32
      %s195 = sadd.s32 %s193, %s194
      %s196 = smul.addr %s195, 8
      %s197 = scalar_lea.vmem %s0, %s196
      %p198 = scmp.lt.s32.totalorder %s18, 1
      %s199 = scalar_select %p198, %s18, 1
      %p200 = scmp.lt.s32.totalorder %s19, 15
      %s201 = scalar_select %p200, %s19, 15
      %s202 = smul.addr %s201, 2
      %s203 = smul.addr %s199, 32
      %s204 = sadd.s32 %s202, %s203
      %s205 = smul.addr %s204, 8
      %s206 = scalar_lea.vmem %s3, %s205
      %v207 = vld [vmem:[%s197] sm:$0xff]
      %v208 = vld [vmem:[%s197 + $0x8] sm:$0xff]
      %v209 = vld [vmem:[%s1] sm:$0x1]
      %v211 = vperm.slane %v209, 0
      %v213 = vmul.f32 %v207, %v211
      %v214 = vmul.f32 %v208, %v211
      %v215 = vld [vmem:[%s2] sm:$0x1]
      %v217 = vperm.slane %v215, 0
      %v219 = vadd.f32 %v213, %v217
      %v220 = vadd.f32 %v214, %v217
      %v221 = vxor.u32 %v219, 2147483648
      %v222 = vxor.u32 %v220, 2147483648
      %v223 = vmul.f32 %v221, 1.442695
      %v224 = vpow.pop %v223
      %v225 = vmul.f32 %v222, 1.442695
      %v226 = vpow.pop %v225
      %v227 = vadd.f32 %v224, 1.0
      %v228 = vadd.f32 %v226, 1.0
      %v229 = vrcp.pop %v227
      %v230 = vmul.f32 %v227, %v229
      %v231 = vsub.f32 1.0, %v230
      %v232 = vmul.f32 %v229, %v231
      %v233 = vadd.f32 %v229, %v232
      %vm234 = vweird.f32 %v227
      %vm235 = vweird.f32 %v229
      %vm236 = vmor %vm234, %vm235
      %v237 = vsel %vm236, %v229, %v233
      %v238 = vand.u32 2147483647, %v227
      %vm239 = vcmp.eq.f32.partialorder %v238, 8.507059e+37
      %v240 = vand.u32 %v227, 2147483648
      %v241 = vor.u32 1.1754944e-38, %v240
      %v242 = vsel %vm239, %v241, %v237
      %v243 = vmul.f32 1.0, %v242
      %v244 = vrcp.pop %v228
      %v245 = vmul.f32 %v228, %v244
      %v246 = vsub.f32 1.0, %v245
      %v247 = vmul.f32 %v244, %v246
      %v248 = vadd.f32 %v244, %v247
      %vm249 = vweird.f32 %v228
      %vm250 = vweird.f32 %v244
      %vm251 = vmor %vm249, %vm250
      %v252 = vsel %vm251, %v244, %v248
      %v253 = vand.u32 2147483647, %v228
      %vm254 = vcmp.eq.f32.partialorder %v253, 8.507059e+37
      %v255 = vand.u32 %v228, 2147483648
      %v256 = vor.u32 1.1754944e-38, %v255
      %v257 = vsel %vm254, %v256, %v252
      %v258 = vmul.f32 1.0, %v257
      %v259 = vmul.f32 %v219, %v243
      %v260 = vmul.f32 %v220, %v258
      %261 = vst [vmem:[%s206] sm:$0xff] %v259
      %262 = vst [vmem:[%s206 + $0x8] sm:$0xff] %v260
      %p263 = scmp.lt.s32.totalorder %s18, 1
      %s264 = scalar_select %p263, %s18, 1
      %p265 = scmp.lt.s32.totalorder %s19, 15
      %s266 = scalar_select %p265, %s19, 15
      %s267 = smul.addr %s266, 2
      %s268 = smul.addr %s264, 32
      %s269 = sadd.s32 %s267, %s268
      %s270 = smul.addr %s269, 8
      %s271 = scalar_lea.vmem %s3, %s270
      // Predicated region
      $region33: #{conv_bn_silu.3} parent=31 // pred_check
        %p272 = pneg %p116
      $region34: #{conv_bn_silu.3} parent=31 // pred_check_branch
        %274 = sbr.rel (%p272) target = $region36
      $region35: #{conv_bn_silu.3} parent=31 // pred_region
        _
      $region36: #{conv_bn_silu.3} parent=31 // pred_fallthru
        _
    $region32: #{conv_bn_silu.3} parent=5 // pred_fallthru
      _
    %p275 = scmp.le.s32.totalorder 2, %s9
    // Predicated region
    $region37: #{conv_bn_silu.3} parent=5 // pred_check
      %p276 = pneg %p275
    $region38: #{conv_bn_silu.3} parent=5 // pred_check_branch
      %278 = sbr.rel (%p276) target = $region40
    $region39: #{conv_bn_silu.3} parent=5 // pred_region
      %s279 = ssub.s32 %s9, 2
      // Predicated region
      $region41: #{conv_bn_silu.3} parent=39 // pred_check
        %p280 = pneg %p122
      $region42: #{conv_bn_silu.3} parent=39 // pred_check_branch
        %282 = sbr.rel (%p280) target = $region44
      $region43: #{conv_bn_silu.3} parent=39 // pred_region
        %p283 = scmp.lt.s32.totalorder %s20, 1
        %s284 = scalar_select %p283, %s20, 1
        %p285 = scmp.lt.s32.totalorder %s21, 15
        %s286 = scalar_select %p285, %s21, 15
        %s287 = smul.addr %s286, 2
        %s288 = smul.addr %s284, 32
        %s289 = sadd.s32 %s287, %s288
        %s290 = smul.addr %s289, 8
        %s291 = scalar_lea.vmem %s3, %s290
      $region44: #{conv_bn_silu.3} parent=39 // pred_fallthru
        _
    $region40: #{conv_bn_silu.3} parent=5 // pred_fallthru
      _
  $region6: #{conv_bn_silu.3} parent=0 // loop_footer
    %s13 = sadd.s32 1, %s9
  $region7: #{conv_bn_silu.3} parent=0 // loop_footer_branch
    %8 = sbr.rel target = $region3
  $region8: #{conv_bn_silu.3} parent=0 // loop_exit
    _

// kernel: conv_bn_silu.2
$region0: #{conv_bn_silu.2}
  #allocation0 [shape = 'u32[]', space=smem, size = 0x4, offset = 0x4, fixed_abs, tag = 'smem constant byte address 0x4 - core index']
  #allocation1 [shape = 'u32[72,128]{1,0:T(1,128)}', space=vmem, size = 0x9000, scoped, tag = 'internal scratch']
  %s0 = inlined_call_operand.vmem [shape: bf16[2,18,18,72], index: 0, kind: input, shape index: {}]
  %s1 = inlined_call_operand.vmem [shape: bf16[3,3,72,128], index: 1, kind: input, shape index: {}]
  %s2 = inlined_call_operand.vmem [shape: f32[2,16,16,128], index: 2, kind: output, shape index: {0}]
  %s3 = inlined_call_operand.vmem [shape: f32[2,16,2,128], index: 3, kind: output, shape index: {1}]
  %4 = xla_tuple %s2, %s3
  %s5 = sld [smem:[#allocation0]]
  $region57: #{conv_bn_silu.2} parent=0
    _
  %s7 = ssub.s32 1, %s5
  %s8 = scalar_select 0, %s7, %s5
  loop: start=0, step=1, limit=98
  $region2: #{conv_bn_silu.2} parent=0 // loop_pre_header
    _
  $region3: #{conv_bn_silu.2} parent=0 // loop_header
    %s10 = sphi 0, %s14
    %p11 = scmp.ge.s32.totalorder %s10, 98
    %s17 = sphi 0, %s36
    %s18 = sphi 0, %s32
    %s19 = sphi 0, %s28
    %s20 = sphi 0, %s17
    %s21 = sphi 0, %s18
    %s22 = sphi 0, %s19
    %s23 = sphi 0, %s20
    %s24 = sphi 0, %s21
    %s25 = sphi 0, %s22
    %s43 = sphi 0, %s45
    %s46 = sphi 0, %s43
    %s47 = sphi 0, %s46
    %s63 = sphi 0, %s47
    %s67 = sphi 0, %s67
    %s69 = sphi 0, %s67
    %s70 = sphi 0, %s69
    %s84 = sphi 0, %s70
    %s92 = sphi 0, %s94
    %s95 = sphi 0, %s92
    %s96 = sphi 0, %s95
    %s112 = sphi 0, %s96
    %s120 = sphi 0, %s122
    %s123 = sphi 0, %s120
    %s124 = sphi 0, %s123
    %s140 = sphi 0, %s124
  $region4: #{conv_bn_silu.2} parent=0 // loop_header_branch
    %13 = sbr.rel (%p11) target = $region8
  $region5: #{conv_bn_silu.2} parent=0 // loop_body
    %s15 = ssub.s32 %s10, 1
    %s16 = ssub.s32 %s10, 2
    %s26 = sadd.s32 1, %s19
    %p27 = scmp.ge.s32.totalorder %s26, 3
    %s28 = scalar_select %p27, 0, %s26
    %s29 = sadd.s32 1, %s18
    %s30 = scalar_select %p27, %s29, %s18
    %p31 = scmp.ge.s32.totalorder %s30, 16
    %s32 = scalar_select %p31, 0, %s30
    %s33 = sadd.s32 1, %s17
    %s34 = scalar_select %p31, %s33, %s17
    %p35 = scmp.ge.s32.totalorder %s34, 2
    %s36 = scalar_select %p35, 0, %s34
    %s37 = sadd.s32 %s18, %s19
    %s38 = sadd.s32 %s32, %s28
    %s39 = ssub.s32 %s17, %s36
    %s40 = ssub.s32 %s37, %s38
    %s41 = sor.u32 %s39, %s40
    %p42 = scmp.eq.s32.totalorder %s41, 0
    %s44 = sadd.s32 %s43, 1
    %s45 = scalar_select %p42, %s43, %s44
    %p48 = pneg %p42
    %p49 = scmp.eq.s32.totalorder %s10, 95
    %p50 = por %p48, %p49
    %p51 = scmp.ne.s32.totalorder %s43, %s46
    %p52 = scmp.eq.s32.totalorder %s10, 0
    %p53 = por %p51, %p52
    %p54 = scmp.ne.s32.totalorder %s43, %s46
    %p55 = scmp.eq.s32.totalorder %s15, 95
    %p56 = por %p54, %p55
    %p57 = scmp.ne.s32.totalorder %s46, %s47
    %p58 = scmp.eq.s32.totalorder %s15, 0
    %p59 = por %p57, %p58
    %p60 = scmp.ne.s32.totalorder %s46, %s47
    %p61 = scmp.eq.s32.totalorder %s16, 95
    %p62 = por %p60, %p61
    %p64 = scmp.ne.s32.totalorder %s47, %s63
    %p65 = scmp.eq.s32.totalorder %s16, 0
    %p66 = por %p64, %p65
    %s68 = sadd.s32 %s67, 1
    %p71 = scmp.eq.s32.totalorder %s10, 95
    %p72 = scmp.ne.s32.totalorder %s67, %s69
    %p73 = scmp.eq.s32.totalorder %s10, 0
    %p74 = por %p72, %p73
    %p75 = scmp.ne.s32.totalorder %s67, %s69
    %p76 = scmp.eq.s32.totalorder %s15, 95
    %p77 = por %p75, %p76
    %p78 = scmp.ne.s32.totalorder %s69, %s70
    %p79 = scmp.eq.s32.totalorder %s15, 0
    %p80 = por %p78, %p79
    %p81 = scmp.ne.s32.totalorder %s69, %s70
    %p82 = scmp.eq.s32.totalorder %s16, 95
    %p83 = por %p81, %p82
    %p85 = scmp.ne.s32.totalorder %s70, %s84
    %p86 = scmp.eq.s32.totalorder %s16, 0
    %p87 = por %p85, %p86
    %s88 = ssub.s32 %s17, %s36
    %s89 = ssub.s32 %s18, %s32
    %s90 = sor.u32 %s88, %s89
    %p91 = scmp.eq.s32.totalorder %s90, 0
    %s93 = sadd.s32 %s92, 1
    %s94 = scalar_select %p91, %s92, %s93
    %p97 = pneg %p91
    %p98 = scmp.eq.s32.totalorder %s10, 95
    %p99 = por %p97, %p98
    %p100 = scmp.ne.s32.totalorder %s92, %s95
    %p101 = scmp.eq.s32.totalorder %s10, 0
    %p102 = por %p100, %p101
    %p103 = scmp.ne.s32.totalorder %s92, %s95
    %p104 = scmp.eq.s32.totalorder %s15, 95
    %p105 = por %p103, %p104
    %p106 = scmp.ne.s32.totalorder %s95, %s96
    %p107 = scmp.eq.s32.totalorder %s15, 0
    %p108 = por %p106, %p107
    %p109 = scmp.ne.s32.totalorder %s95, %s96
    %p110 = scmp.eq.s32.totalorder %s16, 95
    %p111 = por %p109, %p110
    %p113 = scmp.ne.s32.totalorder %s96, %s112
    %p114 = scmp.eq.s32.totalorder %s16, 0
    %p115 = por %p113, %p114
    %s116 = ssub.s32 %s17, %s36
    %s117 = ssub.s32 %s18, %s32
    %s118 = sor.u32 %s116, %s117
    %p119 = scmp.eq.s32.totalorder %s118, 0
    %s121 = sadd.s32 %s120, 1
    %s122 = scalar_select %p119, %s120, %s121
    %p125 = pneg %p119
    %p126 = scmp.eq.s32.totalorder %s10, 95
    %p127 = por %p125, %p126
    %p128 = scmp.ne.s32.totalorder %s120, %s123
    %p129 = scmp.eq.s32.totalorder %s10, 0
    %p130 = por %p128, %p129
    %p131 = scmp.ne.s32.totalorder %s120, %s123
    %p132 = scmp.eq.s32.totalorder %s15, 95
    %p133 = por %p131, %p132
    %p134 = scmp.ne.s32.totalorder %s123, %s124
    %p135 = scmp.eq.s32.totalorder %s15, 0
    %p136 = por %p134, %p135
    %p137 = scmp.ne.s32.totalorder %s123, %s124
    %p138 = scmp.eq.s32.totalorder %s16, 95
    %p139 = por %p137, %p138
    %p141 = scmp.ne.s32.totalorder %s124, %s140
    %p142 = scmp.eq.s32.totalorder %s16, 0
    %p143 = por %p141, %p142
    %p144 = scmp.le.s32.totalorder 1, %s10
    %p145 = scmp.lt.s32.totalorder %s10, 97
    %p146 = pnand %p144, %p145
    %p147 = pneg %p146
    // Predicated region
    $region9: #{conv_bn_silu.2} parent=5 // pred_check
      _
    $region10: #{conv_bn_silu.2} parent=5 // pred_check_branch
      %149 = sbr.rel (%p146) target = $region12
    $region11: #{conv_bn_silu.2} parent=5 // pred_region
      %s150 = ssub.s32 %s10, 1
      // Predicated region
      $region13: #{conv_bn_silu.2} parent=11 // pred_check
        %p151 = pneg %p80
      $region14: #{conv_bn_silu.2} parent=11 // pred_check_branch
        %153 = sbr.rel (%p151) target = $region16
      $region15: #{conv_bn_silu.2} parent=11 // pred_region
        _
      $region16: #{conv_bn_silu.2} parent=11 // pred_fallthru
        _
    $region12: #{conv_bn_silu.2} parent=5 // pred_fallthru
      _
    %p154 = scmp.lt.s32.totalorder %s10, 96
    // Predicated region
    $region17: #{conv_bn_silu.2} parent=5 // pred_check
      %p155 = pneg %p154
    $region18: #{conv_bn_silu.2} parent=5 // pred_check_branch
      %157 = sbr.rel (%p155) target = $region20
    $region19: #{conv_bn_silu.2} parent=5 // pred_region
      // Predicated region
      $region21: #{conv_bn_silu.2} parent=19 // pred_check
        %p158 = pneg %p53
      $region22: #{conv_bn_silu.2} parent=19 // pred_check_branch
        %160 = sbr.rel (%p158) target = $region24
      $region23: #{conv_bn_silu.2} parent=19 // pred_region
        %s161 = sadd.s32 %s18, %s19
        %p162 = scmp.lt.s32.totalorder %s17, 1
        %s163 = scalar_select %p162, %s17, 1
        %p164 = scmp.lt.s32.totalorder %s161, 17
        %s165 = scalar_select %p164, %s161, 17
        %s166 = smul.addr %s165, 3
        %s167 = smul.addr %s163, 54
        %s168 = sadd.s32 %s166, %s167
        %s169 = smul.addr %s168, 4
        %s170 = scalar_lea.vmem %s0, %s169
        %s171 = sadd.s32 %s18, %s19
      $region24: #{conv_bn_silu.2} parent=19 // pred_fallthru
        _
    $region20: #{conv_bn_silu.2} parent=5 // pred_fallthru
      _
    %p172 = scmp.le.s32.totalorder 1, %s10
    %p173 = scmp.lt.s32.totalorder %s10, 97
    %p174 = pnand %p172, %p173
    %p175 = pneg %p174
    // Predicated region
    $region25: #{conv_bn_silu.2} parent=5 // pred_check
      _
    $region26: #{conv_bn_silu.2} parent=5 // pred_check_branch
      %177 = sbr.rel (%p174) target = $region28
    $region27: #{conv_bn_silu.2} parent=5 // pred_region
      %s178 = ssub.s32 %s10, 1
      %s179 = sadd.s32 %s21, %s22
      %p180 = scmp.lt.s32.totalorder %s20, 1
      %s181 = scalar_select %p180, %s20, 1
      %p182 = scmp.lt.s32.totalorder %s179, 17
      %s183 = scalar_select %p182, %s179, 17
      %s184 = smul.addr %s183, 3
      %s185 = smul.addr %s181, 54
      %s186 = sadd.s32 %s184, %s185
      %s187 = smul.addr %s186, 4
      %s188 = scalar_lea.vmem %s0, %s187
      %p189 = pneg %p59
      %p190 = pneg %p56
      %p191 = pneg %p80
      %p192 = pneg %p77
      %p193 = pneg %p108
      %p194 = pneg %p105
      %p195 = scmp.lt.s32.totalorder %s20, 1
      %s196 = scalar_select %p195, %s20, 1
      %p197 = scmp.lt.s32.totalorder %s21, 15
      %s198 = scalar_select %p197, %s21, 15
      %s199 = smul.addr %s198, 2
      %s200 = smul.addr %s196, 32
      %s201 = sadd.s32 %s199, %s200
      %s202 = smul.addr %s201, 8
      %s203 = scalar_lea.vmem %s2, %s202
      %p204 = pneg %p136
      %p205 = pneg %p133
      %p206 = scmp.lt.s32.totalorder %s20, 1
      %s207 = scalar_select %p206, %s20, 1
      %p208 = scmp.lt.s32.totalorder %s21, 15
      %s209 = scalar_select %p208, %s21, 15
      %s210 = smul.addr %s207, 16
      %s211 = sadd.s32 %s209, %s210
      %s212 = smul.addr %s211, 2
      %s213 = scalar_lea.vmem %s3, %s212
      %s214 = sadd.s32 %s21, %s22
      %p215 = scmp.lt.s32.totalorder %s20, 1
      %s216 = scalar_select %p215, %s20, 1
      %p217 = scmp.lt.s32.totalorder %s214, 17
      %s218 = scalar_select %p217, %s214, 17
      %s219 = smul.addr %s218, 3
      %s220 = smul.addr %s216, 54
      %s221 = sadd.s32 %s219, %s220
      %s222 = smul.addr %s221, 4
      %s223 = scalar_lea.vmem %s0, %s222
      %s224 = sadd.s32 %s21, %s22
      %p225 = scmp.lt.s32.totalorder %s20, 1
      %s226 = scalar_select %p225, %s20, 1
      %p227 = scmp.lt.s32.totalorder %s21, 15
      %s228 = scalar_select %p227, %s21, 15
      %s229 = smul.addr %s228, 2
      %s230 = smul.addr %s226, 32
      %s231 = sadd.s32 %s229, %s230
      %s232 = smul.addr %s231, 8
      %s233 = scalar_lea.vmem %s2, %s232
      %p234 = scmp.lt.s32.totalorder %s20, 1
      %s235 = scalar_select %p234, %s20, 1
      %p236 = scmp.lt.s32.totalorder %s21, 15
      %s237 = scalar_select %p236, %s21, 15
      %s238 = smul.addr %s235, 16
      %s239 = sadd.s32 %s237, %s238
      %s240 = smul.addr %s239, 2
      %s241 = scalar_lea.vmem %s3, %s240
      %p243 = scmp.eq.s32.totalorder %s22, 0
      // Predicated region
      $region29: #{conv_bn_silu.2} parent=27 // pred_check
        %p244 = pneg %p243
      $region30: #{conv_bn_silu.2} parent=27 // pred_check_branch
        %246 = sbr.rel (%p244) target = $region32
      $region31: #{conv_bn_silu.2} parent=27 // pred_region
        %247 = vst [vmem:[%s233] sm:$0xff] 0.0
        %248 = vst [vmem:[%s233 + $0x8] sm:$0xff] 0.0
      $region32: #{conv_bn_silu.2} parent=27 // pred_fallthru
        _
      %v249 = vld [vmem:[%s223] sm:$0xf]
      %v250 = vld [vmem:[%s223 + $0x4] sm:$0xf]
      %v251 = vld [vmem:[%s223 + $0x8] sm:$0x1]
      %s252 = smul.u32 %s22, 27
      %s253 = smul.addr %s252, 4
      %s254 = scalar_lea.vmem %s1, %s253
      %v255 = vld [vmem:[%s254] sm:$0xf]
      %v256 = vld [vmem:[%s254 + $0x4] sm:$0xf]
      %v257 = vld [vmem:[%s254 + $0x8] sm:$0xf]
      %v258 = vld [vmem:[%s254 + $0xc] sm:$0xf]
      %v259 = vld [vmem:[%s254 + $0x10] sm:$0xf]
      %v260 = vld [vmem:[%s254 + $0x14] sm:$0xf]
      %v261 = vld [vmem:[%s254 + $0x18] sm:$0xf]
      %v262 = vld [vmem:[%s254 + $0x1c] sm:$0xf]
      %v263 = vld [vmem:[%s254 + $0x20] sm:$0xf]
      %v264 = vld [vmem:[%s254 + $0x24] sm:$0xf]
      %v265 = vld [vmem:[%s254 + $0x28] sm:$0xf]
      %v266 = vld [vmem:[%s254 + $0x2c] sm:$0xf]
      %v267 = vld [vmem:[%s254 + $0x30] sm:$0xf]
      %v268 = vld [vmem:[%s254 + $0x34] sm:$0xf]
      %v269 = vld [vmem:[%s254 + $0x38] sm:$0xf]
      %v270 = vld [vmem:[%s254 + $0x3c] sm:$0xf]
      %v271 = vld [vmem:[%s254 + $0x40] sm:$0xf]
      %v272 = vld [vmem:[%s254 + $0x44] sm:$0xf]
      %v273 = vld [vmem:[%s254 + $0x48] sm:$0xf]
      %v274 = vld [vmem:[%s254 + $0x4c] sm:$0xf]
      %v275 = vld [vmem:[%s254 + $0x50] sm:$0xf]
      %v276 = vld [vmem:[%s254 + $0x54] sm:$0xf]
      %v277 = vld [vmem:[%s254 + $0x58] sm:$0xf]
      %v278 = vld [vmem:[%s254 + $0x5c] sm:$0xf]
      %v279 = vld [vmem:[%s254 + $0x60] sm:$0xf]
      %v280 = vld [vmem:[%s254 + $0x64] sm:$0xf]
      %v281 = vld [vmem:[%s254 + $0x68] sm:$0xf]
      %v282 = vld [vmem:[%s233] sm:$0xff]
      %v283 = vld [vmem:[%s233 + $0x8] sm:$0xff]
      %v286 = vunpack.c.l.b16 %v249
      %v287 = vunpack.c.l.b16 %v250
      %v288 = vpack.c.b16 %v287, %v286
      %v298 = vunpack.c.l.b16 %v255
      %v299 = vunpack.c.l.b16 %v256
      %v300 = vunpack.c.l.b16 %v257
      %v301 = vunpack.c.l.b16 %v258
      %v302 = vunpack.c.l.b16 %v259
      %v303 = vunpack.c.l.b16 %v260
      %v304 = vunpack.c.l.b16 %v261
      %v305 = vunpack.c.l.b16 %v262
      %v306 = vunpack.c.l.b16 %v263
      %v307 = vpack.c.b16 %v299, %v298
      %v308 = vpack.c.b16 %v301, %v300
      %v309 = vpack.c.b16 %v303, %v302
      %v310 = vpack.c.b16 %v305, %v304
      %v311 = vpack.c.b16 %v306, %v306
      %vm316 = vcmask 588800
      %v318 = vsel %vm316, %v288, 0
      %vm320 = vcmask 1043456
      %v322 = vsel %vm320, %v311, 0
      %324 = vmatpush.bf16.msra.mxu0 0
      %325 = vmatpush.bf16.msra.mxu0 0
      %326 = vmatpush.bf16.msra.mxu0 0
      %327 = vmatpush.bf16.msra.mxu0 %v322
      %328 = vmatpush.bf16.msra.mxu0 %v310
      %329 = vmatpush.bf16.msra.mxu0 %v309
      %330 = vmatpush.bf16.msra.mxu0 %v308
      %331 = vmatpush.bf16.msra.mxu0 %v307
      %332 = vmatmul.bf16.gmra.mxu0 %v318
      %v333 = vpop.f32.mrf.mxu0
      %v334 = vadd.f32 0.0, %v333
      %v335 = vpop.f32.mrf.mxu0
      %v336 = vadd.f32 0.0, %v335
      %337 = vdwg.mxu0
      %v338 = vadd.f32 %v282, %v334
      %v339 = vadd.f32 %v283, %v336
      %v341 = vunpack.c.l.b16 %v251
      %v342 = vpack.c.b16 %v341, %v341
      %vm343 = vsmask.f32 7424
      %v344 = vshrl.u32 %v288, 16
      %v346 = vshll.u32 %v288, 16
      %v348 = vrot.slane %v346, 1
      %v349 = vor.u32 %v344, %v348
      %v351 = vshll.u32 %v342, 16
      %v353 = vrot.slane %v351, 1
      %v354 = vsel %vm343, %v349, %v353
      %v364 = vunpack.c.l.b16 %v264
      %v365 = vunpack.c.l.b16 %v265
      %v366 = vunpack.c.l.b16 %v266
      %v367 = vunpack.c.l.b16 %v267
      %v368 = vunpack.c.l.b16 %v268
      %v369 = vunpack.c.l.b16 %v269
      %v370 = vunpack.c.l.b16 %v270
      %v371 = vunpack.c.l.b16 %v271
      %v372 = vunpack.c.l.b16 %v272
      %v373 = vpack.c.b16 %v365, %v364
      %v374 = vpack.c.b16 %v367, %v366
      %v375 = vpack.c.b16 %v369, %v368
      %v376 = vpack.c.b16 %v371, %v370
      %v377 = vpack.c.b16 %v372, %v372
      %v383 = vsel %vm316, %v354, 0
      %v386 = vsel %vm320, %v377, 0
      %388 = vmatpush.bf16.msra.mxu0 0
      %389 = vmatpush.bf16.msra.mxu0 0
      %390 = vmatpush.bf16.msra.mxu0 0
      %391 = vmatpush.bf16.msra.mxu0 %v386
      %392 = vmatpush.bf16.msra.mxu0 %v376
      %393 = vmatpush.bf16.msra.mxu0 %v375
      %394 = vmatpush.bf16.msra.mxu0 %v374
      %395 = vmatpush.bf16.msra.mxu0 %v373
      %396 = vmatmul.bf16.gmra.mxu0 %v383
      %v397 = vpop.f32.mrf.mxu0
      %v398 = vadd.f32 0.0, %v397
      %v399 = vpop.f32.mrf.mxu0
      %v400 = vadd.f32 0.0, %v399
      %401 = vdwg.mxu0
      %v402 = vadd.f32 %v338, %v398
      %v403 = vadd.f32 %v339, %v400
      %vm404 = vcmask 1046528
      %v405 = vrot.slane %v288, 1
      %v406 = vrot.slane %v342, 1
      %v407 = vsel %vm404, %v405, %v406
      %v417 = vunpack.c.l.b16 %v273
      %v418 = vunpack.c.l.b16 %v274
      %v419 = vunpack.c.l.b16 %v275
      %v420 = vunpack.c.l.b16 %v276
      %v421 = vunpack.c.l.b16 %v277
      %v422 = vunpack.c.l.b16 %v278
      %v423 = vunpack.c.l.b16 %v279
      %v424 = vunpack.c.l.b16 %v280
      %v425 = vunpack.c.l.b16 %v281
      %v426 = vpack.c.b16 %v418, %v417
      %v427 = vpack.c.b16 %v420, %v419
      %v428 = vpack.c.b16 %v422, %v421
      %v429 = vpack.c.b16 %v424, %v423
      %v430 = vpack.c.b16 %v425, %v425
      %v436 = vsel %vm316, %v407, 0
      %v439 = vsel %vm320, %v430, 0
      %441 = vmatpush.bf16.msra.mxu0 0
      %442 = vmatpush.bf16.msra.mxu0 0
      %443 = vmatpush.bf16.msra.mxu0 0
      %444 = vmatpush.bf16.msra.mxu0 %v439
      %445 = vmatpush.bf16.msra.mxu0 %v429
      %446 = vmatpush.bf16.msra.mxu0 %v428
      %447 = vmatpush.bf16.msra.mxu0 %v427
      %448 = vmatpush.bf16.msra.mxu0 %v426
      %449 = vmatmul.bf16.gmra.mxu0 %v436
      %v450 = vpop.f32.mrf.mxu0
      %v451 = vadd.f32 0.0, %v450
      %v452 = vpop.f32.mrf.mxu0
      %v453 = vadd.f32 0.0, %v452
      %454 = vdwg.mxu0
      %v455 = vadd.f32 %v402, %v451
      %v456 = vadd.f32 %v403, %v453
      %457 = vst [vmem:[%s233] sm:$0xff] %v455
      %458 = vst [vmem:[%s233 + $0x8] sm:$0xff] %v456
      %p459 = scmp.eq.s32.totalorder %s22, 2
      // Predicated region
      $region33: #{conv_bn_silu.2} parent=27 // pred_check
        %p460 = pneg %p459
      $region34: #{conv_bn_silu.2} parent=27 // pred_check_branch
        %462 = sbr.rel (%p460) target = $region36
      $region35: #{conv_bn_silu.2} parent=27 // pred_region
        %v463 = vadd.f32 %v455, %v456
        %v464 = vrot.slane %v463, 4
        %v465 = vadd.f32 %v463, %v464
        %v466 = vrot.slane %v465, 2
        %v467 = vadd.f32 %v465, %v466
        %v468 = vrot.slane %v467, 1
        %v469 = vadd.f32 %v467, %v468
        %v470 = vmul.f32 %v455, %v455
        %v471 = vmul.f32 %v456, %v456
        %v472 = vadd.f32 %v470, %v471
        %v473 = vrot.slane %v472, 4
        %v474 = vadd.f32 %v472, %v473
        %v475 = vrot.slane %v474, 2
        %v476 = vadd.f32 %v474, %v475
        %v477 = vrot.slane %v476, 1
        %v478 = vadd.f32 %v476, %v477
        %vm479 = vcmask 1040384
        %v480 = vsel %vm479, %v469, %v478
        %481 = vst [vmem:[%s241] sm:$0x3] %v480
      $region36: #{conv_bn_silu.2} parent=27 // pred_fallthru
        _
      %p482 = scmp.lt.s32.totalorder %s20, 1
      %s483 = scalar_select %p482, %s20, 1
      %p484 = scmp.lt.s32.totalorder %s21, 15
      %s485 = scalar_select %p484, %s21, 15
      %s486 = smul.addr %s485, 2
      %s487 = smul.addr %s483, 32
      %s488 = sadd.s32 %s486, %s487
      %s489 = smul.addr %s488, 8
      %s490 = scalar_lea.vmem %s2, %s489
      %p491 = scmp.lt.s32.totalorder %s20, 1
      %s492 = scalar_select %p491, %s20, 1
      %p493 = scmp.lt.s32.totalorder %s21, 15
      %s494 = scalar_select %p493, %s21, 15
      %s495 = smul.addr %s492, 16
      %s496 = sadd.s32 %s494, %s495
      %s497 = smul.addr %s496, 2
      %s498 = scalar_lea.vmem %s3, %s497
      // Predicated region
      $region37: #{conv_bn_silu.2} parent=27 // pred_check
        %p499 = pneg %p105
      $region38: #{conv_bn_silu.2} parent=27 // pred_check_branch
        %501 = sbr.rel (%p499) target = $region40
      $region39: #{conv_bn_silu.2} parent=27 // pred_region
        _
      $region40: #{conv_bn_silu.2} parent=27 // pred_fallthru
        _
      // Predicated region
      $region41: #{conv_bn_silu.2} parent=27 // pred_check
        %p502 = pneg %p133
      $region42: #{conv_bn_silu.2} parent=27 // pred_check_branch
        %504 = sbr.rel (%p502) target = $region44
      $region43: #{conv_bn_silu.2} parent=27 // pred_region
        _
      $region44: #{conv_bn_silu.2} parent=27 // pred_fallthru
        _
    $region28: #{conv_bn_silu.2} parent=5 // pred_fallthru
      _
    %p505 = scmp.le.s32.totalorder 2, %s10
    // Predicated region
    $region45: #{conv_bn_silu.2} parent=5 // pred_check
      %p506 = pneg %p505
    $region46: #{conv_bn_silu.2} parent=5 // pred_check_branch
      %508 = sbr.rel (%p506) target = $region48
    $region47: #{conv_bn_silu.2} parent=5 // pred_region
      %s509 = ssub.s32 %s10, 2
      // Predicated region
      $region49: #{conv_bn_silu.2} parent=47 // pred_check
        %p510 = pneg %p111
      $region50: #{conv_bn_silu.2} parent=47 // pred_check_branch
        %512 = sbr.rel (%p510) target = $region52
      $region51: #{conv_bn_silu.2} parent=47 // pred_region
        %p513 = scmp.lt.s32.totalorder %s23, 1
        %s514 = scalar_select %p513, %s23, 1
        %p515 = scmp.lt.s32.totalorder %s24, 15
        %s516 = scalar_select %p515, %s24, 15
        %s517 = smul.addr %s516, 2
        %s518 = smul.addr %s514, 32
        %s519 = sadd.s32 %s517, %s518
        %s520 = smul.addr %s519, 8
        %s521 = scalar_lea.vmem %s2, %s520
      $region52: #{conv_bn_silu.2} parent=47 // pred_fallthru
        _
      // Predicated region
      $region53: #{conv_bn_silu.2} parent=47 // pred_check
        %p522 = pneg %p139
      $region54: #{conv_bn_silu.2} parent=47 // pred_check_branch
        %524 = sbr.rel (%p522) target = $region56
      $region55: #{conv_bn_silu.2} parent=47 // pred_region
        %p525 = scmp.lt.s32.totalorder %s23, 1
        %s526 = scalar_select %p525, %s23, 1
        %p527 = scmp.lt.s32.totalorder %s24, 15
        %s528 = scalar_select %p527, %s24, 15
        %s529 = smul.addr %s526, 16
        %s530 = sadd.s32 %s528, %s529
        %s531 = smul.addr %s530, 2
        %s532 = scalar_lea.vmem %s3, %s531
      $region56: #{conv_bn_silu.2} parent=47 // pred_fallthru
        _
    $region48: #{conv_bn_silu.2} parent=5 // pred_fallthru
      _
  $region6: #{conv_bn_silu.2} parent=0 // loop_footer
    %s14 = sadd.s32 1, %s10
  $region7: #{conv_bn_silu.2} parent=0 // loop_footer_branch
    %9 = sbr.rel target = $region3
  $region8: #{conv_bn_silu.2} parent=0 // loop_exit
    _

</llo_original>
